<compile_context>
chip_gen: v7x
topology: tpu7x:2x2x1
jax: 0.10.0
libtpu: 0.0.40
codegen_flags: <defaults>
</compile_context>

<pallas_src>
import functools

import jax
import jax.numpy as jnp
from jax.experimental import pallas as pl
from jax.experimental.pallas import tpu as pltpu


HIDDEN = 128                    # nn.Linear(state_dim, 128)
COMPUTE_DTYPE = jnp.bfloat16    # MXU input dtype (accumulation stays f32)
TB_CAP = 2048                   # max batch-tile rows (dbl-buffered ~3-4 MiB VMEM)


def _round_up(x, m):
    return ((x + m - 1) // m) * m


def _pick_batch_tile(B):
    """Batch tile: multiple of 16, capped, and >=2 grid steps for large B."""
    if B <= 32:
        return _round_up(max(B, 1), 16)
    # Split into at least 2 grid steps so v7x's two TensorCores both get work.
    tb = _round_up(-(-B // 2), 16)
    return min(TB_CAP, tb)


def _actor_kernel(feat_ref, w1_ref, b1_ref, w2_ref, b2_ref, out_ref):
    """Fused per-batch-tile: h = relu(feat @ w1 + b1); out = h @ w2 + b2."""
    # In-kernel bf16 cast of the streamed f32 feat tile (VPU) -> bf16 MXU path.
    feat = feat_ref[...].astype(COMPUTE_DTYPE)
    # (TB, S) x (S, 128) -> f32 (TB, 128) on the MXU.
    h = jnp.dot(feat, w1_ref[...], preferred_element_type=jnp.float32)
    h = jnp.maximum(h + b1_ref[...], 0.0)                      # f32 bias + ReLU
    # Second matmul also bf16-in / f32-acc.
    out = jnp.dot(h.astype(w2_ref.dtype), w2_ref[...],
                  preferred_element_type=jnp.float32)
    out_ref[...] = (out + b2_ref[...]).astype(out_ref.dtype)


@functools.partial(jax.jit, static_argnames=("action_dims",))
def ppo_actor_forward(feat, w1, b1, w2, b2, *, action_dims):
    """feat: (B, state_dim) f32.  w1: (state_dim, 128), w2: (128, D_pad).

    Returns a list of per-head logits (f32), one per entry in action_dims.
    """
    B, S = feat.shape
    assert w1.shape[0] == S and w1.shape[1] == HIDDEN
    D_pad = w2.shape[1]

    TB = _pick_batch_tile(B)
    grid = (pl.cdiv(B, TB),)

    # Weights are tiny ((S,128) and (128,D_pad)); casting them here is
    # negligible HBM traffic.  Biases stay f32 for the in-kernel f32 path.
    w1_c = w1.astype(COMPUTE_DTYPE)
    w2_c = w2.astype(COMPUTE_DTYPE)

    out = pl.pallas_call(
        _actor_kernel,
        out_shape=jax.ShapeDtypeStruct((B, D_pad), jnp.float32),
        grid_spec=pltpu.PrefetchScalarGridSpec(
            num_scalar_prefetch=0,
            grid=grid,
            in_specs=[
                # feat: streamed f32 at natural width, tiled along batch.
                pl.BlockSpec((TB, S), lambda i: (i, 0)),
                # weights / biases: constant index_map -> fetched once,
                # VMEM-resident across all grid steps.
                pl.BlockSpec((S, HIDDEN), lambda i: (0, 0)),
                pl.BlockSpec((1, HIDDEN), lambda i: (0, 0)),
                pl.BlockSpec((HIDDEN, D_pad), lambda i: (0, 0)),
                pl.BlockSpec((1, D_pad), lambda i: (0, 0)),
            ],
            out_specs=pl.BlockSpec((TB, D_pad), lambda i: (i, 0)),
        ),
        compiler_params=pltpu.CompilerParams(
            # Batch tiles are independent -> shard across v7x's 2 TCs.
            dimension_semantics=("parallel",),
            vmem_limit_bytes=32 * 1024 * 1024,
        ),
    )(feat, w1_c, b1, w2_c, b2)

    # Split the concatenated (lane-padded) head block back into per-head logits.
    logits, off = [], 0
    for d in action_dims:
        logits.append(out[:, off:off + d])
        off += d
    return logits


def init_params(key, state_dim, action_dims):
    """PyTorch-Linear-style init (U[-1/sqrt(fan_in), +]).

    Weights are stored transposed w.r.t. PyTorch ((in, out)); only the head
    output axis is padded to a lane-dense 128 multiple:
      w1: (state_dim, 128),  b1: (1, 128)
      w2: (128, D_pad),      b2: (1, D_pad)   -- heads concatenated.
    """
    k1, k2, k3, k4 = jax.random.split(key, 4)

    lim1 = 1.0 / jnp.sqrt(jnp.float32(state_dim))
    w1 = jax.random.uniform(k1, (state_dim, HIDDEN), jnp.float32, -lim1, lim1)
    b1 = jax.random.uniform(k2, (1, HIDDEN), jnp.float32, -lim1, lim1)

    D_total = sum(action_dims)
    D_pad = max(_round_up(D_total, 128), 128)
    lim2 = 1.0 / jnp.sqrt(jnp.float32(HIDDEN))
    w2 = jax.random.uniform(k3, (HIDDEN, D_total), jnp.float32, -lim2, lim2)
    b2 = jax.random.uniform(k4, (1, D_total), jnp.float32, -lim2, lim2)
    w2_pad = jnp.zeros((HIDDEN, D_pad), jnp.float32).at[:, :D_total].set(w2)
    b2_pad = jnp.zeros((1, D_pad), jnp.float32).at[:, :D_total].set(b2)

    return w1, b1, w2_pad, b2_pad


def reference_forward(feat, w1, b1, w2, b2, action_dims, compute_dtype):
    """Pure-JAX reference replicating the kernel's arithmetic."""
    f = feat.astype(compute_dtype)
    h = jnp.dot(f, w1.astype(compute_dtype), preferred_element_type=jnp.float32)
    h = jnp.maximum(h + b1, 0.0)
    out = jnp.dot(h.astype(compute_dtype), w2.astype(compute_dtype),
                  preferred_element_type=jnp.float32) + b2
    logits, off = [], 0
    for d in action_dims:
        logits.append(out[:, off:off + d])
        off += d
    return logits


if __name__ == "__main__":
    # Small synthetic shapes implied by the module:
    #   state_dim = 32, action_dims = [len(env.non_main), n_move_dir, n_rot]
    B = 2
    STATE_DIM = 32
    ACTION_DIMS = (6, 4, 2)

    key = jax.random.PRNGKey(0)
    k_feat, k_params = jax.random.split(key)
    feat = jax.random.normal(k_feat, (B, STATE_DIM), jnp.float32)
    w1, b1, w2, b2 = init_params(k_params, STATE_DIM, ACTION_DIMS)

    logits = ppo_actor_forward(feat, w1, b1, w2, b2, action_dims=ACTION_DIMS)
    logits = [jax.block_until_ready(l) for l in logits]

    # Reference with identical bf16-input / f32-accumulate arithmetic.
    ref = reference_forward(feat, w1, b1, w2, b2, ACTION_DIMS, COMPUTE_DTYPE)
    for got, exp, d in zip(logits, ref, ACTION_DIMS):
        assert got.shape == (B, d), got.shape
        assert jnp.allclose(got, exp, atol=1e-3, rtol=1e-3)

    # Loose sanity check against a pure-f32 reference (bf16 rounding only).
    ref_f32 = reference_forward(feat, w1, b1, w2, b2, ACTION_DIMS, jnp.float32)
    for got, exp in zip(logits, ref_f32):
        assert jnp.allclose(got, exp, atol=5e-2, rtol=5e-2)

    print("KERNEL_OK")
</pallas_src>

<mosaic_0001>
module attributes {stable_mosaic.version = 11 : i64} {
  func.func @_actor_kernel(%arg0: i32, %arg1: memref<16x32xf32, #tpu.memory_space<vmem>>, %arg2: memref<32x128xbf16, #tpu.memory_space<vmem>>, %arg3: memref<1x128xf32, #tpu.memory_space<vmem>>, %arg4: memref<128x128xbf16, #tpu.memory_space<vmem>>, %arg5: memref<1x128xf32, #tpu.memory_space<vmem>>, %arg6: memref<16x128xf32, #tpu.memory_space<vmem>>) attributes {dimension_semantics = [#tpu.dimension_semantics<parallel>], iteration_bounds = array<i64: 1>, scalar_prefetch = 0 : i64, scratch_operands = 0 : i64, tpu.core_type = #tpu.core_type<tc>, window_params = [{transform_indices = @transform_0, window_bounds = array<i64: 16, 32>}, {pipeline_mode = #tpu.pipeline_mode<synchronous>, transform_indices = @transform_1, window_bounds = array<i64: 32, 128>}, {pipeline_mode = #tpu.pipeline_mode<synchronous>, transform_indices = @transform_2, window_bounds = array<i64: 1, 128>}, {pipeline_mode = #tpu.pipeline_mode<synchronous>, transform_indices = @transform_3, window_bounds = array<i64: 128, 128>}, {pipeline_mode = #tpu.pipeline_mode<synchronous>, transform_indices = @transform_4, window_bounds = array<i64: 1, 128>}, {transform_indices = @transform_5, window_bounds = array<i64: 16, 128>}]} {
    %c0 = arith.constant 0 : index
    %c0_0 = arith.constant 0 : index
    %0 = vector.load %arg1[%c0, %c0_0] : memref<16x32xf32, #tpu.memory_space<vmem>>, vector<16x32xf32>
    %1 = arith.truncf %0 : vector<16x32xf32> to vector<16x32xbf16>
    %c0_1 = arith.constant 0 : index
    %c0_2 = arith.constant 0 : index
    %2 = vector.load %arg2[%c0_1, %c0_2] : memref<32x128xbf16, #tpu.memory_space<vmem>>, vector<32x128xbf16>
    %cst = arith.constant dense<0.000000e+00> : vector<16x128xf32>
    %3 = tpu.matmul %1, %2, %cst {dimension_numbers = #tpu.dot_dimension_numbers<[1], [0], [0], [1], [0, 0, 1, 1], [], []>} : vector<16x32xbf16>, vector<32x128xbf16>, vector<16x128xf32> -> vector<16x128xf32>
    %c0_3 = arith.constant 0 : index
    %c0_4 = arith.constant 0 : index
    %4 = vector.load %arg3[%c0_3, %c0_4] : memref<1x128xf32, #tpu.memory_space<vmem>>, vector<1x128xf32>
    %5 = vector.broadcast %4 : vector<1x128xf32> to vector<16x128xf32>
    %6 = arith.addf %3, %5 : vector<16x128xf32>
    %cst_5 = arith.constant 0.000000e+00 : f32
    %7 = vector.broadcast %cst_5 : f32 to vector<16x128xf32>
    %8 = arith.maximumf %6, %7 : vector<16x128xf32>
    %9 = arith.truncf %8 : vector<16x128xf32> to vector<16x128xbf16>
    %c0_6 = arith.constant 0 : index
    %c0_7 = arith.constant 0 : index
    %10 = vector.load %arg4[%c0_6, %c0_7] : memref<128x128xbf16, #tpu.memory_space<vmem>>, vector<128x128xbf16>
    %cst_8 = arith.constant dense<0.000000e+00> : vector<16x128xf32>
    %11 = tpu.matmul %9, %10, %cst_8 {dimension_numbers = #tpu.dot_dimension_numbers<[1], [0], [0], [1], [0, 0, 1, 1], [], []>} : vector<16x128xbf16>, vector<128x128xbf16>, vector<16x128xf32> -> vector<16x128xf32>
    %c0_9 = arith.constant 0 : index
    %c0_10 = arith.constant 0 : index
    %12 = vector.load %arg5[%c0_9, %c0_10] : memref<1x128xf32, #tpu.memory_space<vmem>>, vector<1x128xf32>
    %13 = vector.broadcast %12 : vector<1x128xf32> to vector<16x128xf32>
    %14 = arith.addf %11, %13 : vector<16x128xf32>
    %c0_11 = arith.constant 0 : index
    %c0_12 = arith.constant 0 : index
    %15 = vector.load %arg6[%c0_11, %c0_12] : memref<16x128xf32, #tpu.memory_space<vmem>>, vector<16x128xf32>
    tpu.vector_store %arg6[%c0_11, %c0_12], %14 {strides = array<i32>} : memref<16x128xf32, #tpu.memory_space<vmem>>, vector<16x128xf32>,
    return
  }
  func.func @transform_0(%arg0: i32) -> (i32, i32) {
    %c0_i32 = arith.constant 0 : i32
    %c0_i32_0 = arith.constant 0 : i32
    return %arg0, %c0_i32 : i32, i32
  }
  func.func @transform_1(%arg0: i32) -> (i32, i32) {
    %c0_i32 = arith.constant 0 : i32
    %c0_i32_0 = arith.constant 0 : i32
    %c0_i32_1 = arith.constant 0 : i32
    return %c0_i32, %c0_i32_0 : i32, i32
  }
  func.func @transform_2(%arg0: i32) -> (i32, i32) {
    %c0_i32 = arith.constant 0 : i32
    %c0_i32_0 = arith.constant 0 : i32
    %c0_i32_1 = arith.constant 0 : i32
    return %c0_i32, %c0_i32_0 : i32, i32
  }
  func.func @transform_3(%arg0: i32) -> (i32, i32) {
    %c0_i32 = arith.constant 0 : i32
    %c0_i32_0 = arith.constant 0 : i32
    %c0_i32_1 = arith.constant 0 : i32
    return %c0_i32, %c0_i32_0 : i32, i32
  }
  func.func @transform_4(%arg0: i32) -> (i32, i32) {
    %c0_i32 = arith.constant 0 : i32
    %c0_i32_0 = arith.constant 0 : i32
    %c0_i32_1 = arith.constant 0 : i32
    return %c0_i32, %c0_i32_0 : i32, i32
  }
  func.func @transform_5(%arg0: i32) -> (i32, i32) {
    %c0_i32 = arith.constant 0 : i32
    %c0_i32_0 = arith.constant 0 : i32
    return %arg0, %c0_i32 : i32, i32
  }
}

</mosaic_0001>

<llo_original>
// kernel: ppo_actor_forward.1
$region0: #{ppo_actor_forward.1}
  #allocation0 [shape = 'u32[]', space=smem, size = 0x4, offset = 0x4, fixed_abs, tag = 'smem constant byte address 0x4 - core index']
  #allocation1 [shape = 'u32[144,128]{1,0:T(1,128)}', space=vmem, size = 0x12000, scoped, tag = 'internal scratch']
  %s0 = inlined_call_operand.vmem [shape: f32[2,32], index: 0, kind: input, shape index: {}]
  %s1 = inlined_call_operand.vmem [shape: bf16[32,128], index: 1, kind: input, shape index: {}]
  %s2 = inlined_call_operand.vmem [shape: f32[1,128], index: 2, kind: input, shape index: {}]
  %s3 = inlined_call_operand.vmem [shape: bf16[128,128], index: 3, kind: input, shape index: {}]
  %s4 = inlined_call_operand.vmem [shape: f32[1,128], index: 4, kind: input, shape index: {}]
  %s5 = inlined_call_operand.vmem [shape: f32[2,128], index: 5, kind: output, shape index: {}]
  %s6 = sld [smem:[#allocation0]]
  $region60: #{ppo_actor_forward.1} parent=0
    _
  %s8 = ssub.s32 1, %s6
  %s9 = scalar_select 0, %s8, %s6
  $region1: #{ppo_actor_forward.1} parent=0
    #allocation2 [shape = 'u8[8192]{0}', space=vmem, size = 0x2000, scoped, tag = 'output window, operand 0, single buffered']
    // Predicated region
    $region2: #{ppo_actor_forward.1} parent=1 // pred_check
      _
    $region3: #{ppo_actor_forward.1} parent=1 // pred_check_branch
      %11 = sbr.rel (0) target = $region5
    $region4: #{ppo_actor_forward.1} parent=1 // pred_region
      _
    $region5: #{ppo_actor_forward.1} parent=1 // pred_fallthru
      _
    // Predicated region
    $region6: #{ppo_actor_forward.1} parent=1 // pred_check
      _
    $region7: #{ppo_actor_forward.1} parent=1 // pred_check_branch
      %13 = sbr.rel (0) target = $region9
    $region8: #{ppo_actor_forward.1} parent=1 // pred_region
      _
    $region9: #{ppo_actor_forward.1} parent=1 // pred_fallthru
      _
    // Predicated region
    $region10: #{ppo_actor_forward.1} parent=1 // pred_check
      _
    $region11: #{ppo_actor_forward.1} parent=1 // pred_check_branch
      %15 = sbr.rel (0) target = $region13
    $region12: #{ppo_actor_forward.1} parent=1 // pred_region
      _
    $region13: #{ppo_actor_forward.1} parent=1 // pred_fallthru
      _
    // Predicated region
    $region14: #{ppo_actor_forward.1} parent=1 // pred_check
      _
    $region15: #{ppo_actor_forward.1} parent=1 // pred_check_branch
      %17 = sbr.rel (0) target = $region17
    $region16: #{ppo_actor_forward.1} parent=1 // pred_region
      _
    $region17: #{ppo_actor_forward.1} parent=1 // pred_fallthru
      _
    // Predicated region
    $region18: #{ppo_actor_forward.1} parent=1 // pred_check
      _
    $region19: #{ppo_actor_forward.1} parent=1 // pred_check_branch
      %19 = sbr.rel (0) target = $region21
    $region20: #{ppo_actor_forward.1} parent=1 // pred_region
      _
    $region21: #{ppo_actor_forward.1} parent=1 // pred_fallthru
      _
    %v21 = vld [vmem:[%s0] sm:$0xff]
    %v22 = vld [vmem:[%s0 + $0x8] sm:$0xff]
    %v23 = vpack.c.bf16 %v22, %v21
    %v24 = vld [vmem:[%s1] sm:$0xf]
    %v25 = vld [vmem:[%s1 + $0x4] sm:$0xf]
    %v26 = vld [vmem:[%s1 + $0x8] sm:$0xf]
    %v27 = vld [vmem:[%s1 + $0xc] sm:$0xf]
    %v28 = vld [vmem:[%s2] sm:$0x1]
    %v30 = vlaneseq
    %v31 = vshrl.u32 %v30, 7
    %v32 = vsub.s32 0, %v31
    %v33 = vrot.slane %v28, %v32
    %v39 = vunpack.c.l.b16 %v24
    %v40 = vunpack.c.l.b16 %v25
    %v41 = vunpack.c.l.b16 %v26
    %v42 = vunpack.c.l.b16 %v27
    %v43 = vpack.c.b16 %v40, %v39
    %v44 = vpack.c.b16 %v42, %v41
    %vm47 = vcmask 261120
    %v49 = vsel %vm47, %v23, 0
    %51 = vmatprep.subr.bf16.mxu0 0
    %52 = vmatpush1.bf16.msra.mxu0 %v43
    %53 = vmatprep.subr.bf16.mxu0 0
    %54 = vmatpush1.bf16.msra.mxu0 %v44
    %55 = vmatprep.subr.bf16.mxu0 0
    %56 = vmatpush1.bf16.msra.mxu0 0
    %57 = vmatprep.subr.bf16.mxu0 0
    %58 = vmatpush1.bf16.msra.mxu0 0
    %59 = vmatprep.subr.bf16.mxu0 0
    %60 = vmatpush1.bf16.msra.mxu0 0
    %61 = vmatprep.subr.bf16.mxu0 0
    %62 = vmatpush1.bf16.msra.mxu0 0
    %63 = vmatprep.subr.bf16.mxu0 0
    %64 = vmatpush1.bf16.msra.mxu0 0
    %65 = vmatprep.subr.bf16.mxu0 0
    %66 = vmatpush1.bf16.msra.mxu0 0
    %67 = vmatprep.subr.bf16.mxu0 0
    %68 = vmatpush1.bf16.msra.mxu0 0
    %69 = vmatprep.subr.bf16.mxu0 0
    %70 = vmatpush1.bf16.msra.mxu0 0
    %71 = vmatprep.subr.bf16.mxu0 0
    %72 = vmatpush1.bf16.msra.mxu0 0
    %73 = vmatprep.subr.bf16.mxu0 0
    %74 = vmatpush1.bf16.msra.mxu0 0
    %75 = vmatprep.subr.bf16.mxu0 0
    %76 = vmatpush1.bf16.msra.mxu0 0
    %77 = vmatprep.subr.bf16.mxu0 0
    %78 = vmatpush1.bf16.msra.mxu0 0
    %79 = vmatprep.subr.bf16.mxu0 0
    %80 = vmatpush1.bf16.msra.mxu0 0
    %81 = vmatprep.subr.bf16.mxu0 0
    %82 = vmatpush1.bf16.msra.mxu0 0
    %83 = vmatprep.mubr.bf16.mxu0 0
    %84 = vmatmul.mubr.bf16.gmra.mrb[0].mxu0 %v49
    %v85 = vpop.f32.mrb[0].mxu0
    %v86 = vadd.f32 %v33, %v85
    %v87 = vpop.f32.mrb[0].mxu0
    %v88 = vpop.f32.mrb[0].mxu0
    %v89 = vadd.f32 %v33, %v88
    %v90 = vpop.f32.mrb[0].mxu0
    %91 = vdwg.mxu0
    %v92 = vmax.f32 %v86, 0.0
    %v93 = vmax.f32 %v89, 0.0
    %v94 = vpack.c.bf16 %v93, %v92
    %v95 = vld [vmem:[%s3] sm:$0xf]
    %v96 = vld [vmem:[%s3 + $0x4] sm:$0xf]
    %v97 = vld [vmem:[%s3 + $0x8] sm:$0xf]
    %v98 = vld [vmem:[%s3 + $0xc] sm:$0xf]
    %v99 = vld [vmem:[%s3 + $0x10] sm:$0xf]
    %v100 = vld [vmem:[%s3 + $0x14] sm:$0xf]
    %v101 = vld [vmem:[%s3 + $0x18] sm:$0xf]
    %v102 = vld [vmem:[%s3 + $0x1c] sm:$0xf]
    %v103 = vld [vmem:[%s3 + $0x20] sm:$0xf]
    %v104 = vld [vmem:[%s3 + $0x24] sm:$0xf]
    %v105 = vld [vmem:[%s3 + $0x28] sm:$0xf]
    %v106 = vld [vmem:[%s3 + $0x2c] sm:$0xf]
    %v107 = vld [vmem:[%s3 + $0x30] sm:$0xf]
    %v108 = vld [vmem:[%s3 + $0x34] sm:$0xf]
    %v109 = vld [vmem:[%s3 + $0x38] sm:$0xf]
    %v110 = vld [vmem:[%s3 + $0x3c] sm:$0xf]
    %v111 = vld [vmem:[%s4] sm:$0x1]
    %v113 = vlaneseq
    %v114 = vshrl.u32 %v113, 7
    %v115 = vsub.s32 0, %v114
    %v116 = vrot.slane %v111, %v115
    %v134 = vunpack.c.l.b16 %v95
    %v135 = vunpack.c.l.b16 %v96
    %v136 = vunpack.c.l.b16 %v97
    %v137 = vunpack.c.l.b16 %v98
    %v138 = vunpack.c.l.b16 %v99
    %v139 = vunpack.c.l.b16 %v100
    %v140 = vunpack.c.l.b16 %v101
    %v141 = vunpack.c.l.b16 %v102
    %v142 = vunpack.c.l.b16 %v103
    %v143 = vunpack.c.l.b16 %v104
    %v144 = vunpack.c.l.b16 %v105
    %v145 = vunpack.c.l.b16 %v106
    %v146 = vunpack.c.l.b16 %v107
    %v147 = vunpack.c.l.b16 %v108
    %v148 = vunpack.c.l.b16 %v109
    %v149 = vunpack.c.l.b16 %v110
    %v150 = vpack.c.b16 %v135, %v134
    %v151 = vpack.c.b16 %v137, %v136
    %v152 = vpack.c.b16 %v139, %v138
    %v153 = vpack.c.b16 %v141, %v140
    %v154 = vpack.c.b16 %v143, %v142
    %v155 = vpack.c.b16 %v145, %v144
    %v156 = vpack.c.b16 %v147, %v146
    %v157 = vpack.c.b16 %v149, %v148
    %166 = vmatprep.subr.bf16.mxu0 0
    %167 = vmatpush1.bf16.msra.mxu0 %v150
    %168 = vmatprep.subr.bf16.mxu0 0
    %169 = vmatpush1.bf16.msra.mxu0 %v151
    %170 = vmatprep.subr.bf16.mxu0 0
    %171 = vmatpush1.bf16.msra.mxu0 %v152
    %172 = vmatprep.subr.bf16.mxu0 0
    %173 = vmatpush1.bf16.msra.mxu0 %v153
    %174 = vmatprep.subr.bf16.mxu0 0
    %175 = vmatpush1.bf16.msra.mxu0 %v154
    %176 = vmatprep.subr.bf16.mxu0 0
    %177 = vmatpush1.bf16.msra.mxu0 %v155
    %178 = vmatprep.subr.bf16.mxu0 0
    %179 = vmatpush1.bf16.msra.mxu0 %v156
    %180 = vmatprep.subr.bf16.mxu0 0
    %181 = vmatpush1.bf16.msra.mxu0 %v157
    %182 = vmatprep.subr.bf16.mxu0 0
    %183 = vmatpush1.bf16.msra.mxu0 0
    %184 = vmatprep.subr.bf16.mxu0 0
    %185 = vmatpush1.bf16.msra.mxu0 0
    %186 = vmatprep.subr.bf16.mxu0 0
    %187 = vmatpush1.bf16.msra.mxu0 0
    %188 = vmatprep.subr.bf16.mxu0 0
    %189 = vmatpush1.bf16.msra.mxu0 0
    %190 = vmatprep.subr.bf16.mxu0 0
    %191 = vmatpush1.bf16.msra.mxu0 0
    %192 = vmatprep.subr.bf16.mxu0 0
    %193 = vmatpush1.bf16.msra.mxu0 0
    %194 = vmatprep.subr.bf16.mxu0 0
    %195 = vmatpush1.bf16.msra.mxu0 0
    %196 = vmatprep.subr.bf16.mxu0 0
    %197 = vmatpush1.bf16.msra.mxu0 0
    %198 = vmatprep.mubr.bf16.mxu0 0
    %199 = vmatmul.mubr.bf16.gmra.mrb[0].mxu0 %v94
    %v200 = vpop.f32.mrb[0].mxu0
    %v201 = vadd.f32 %v116, %v200
    %v202 = vpop.f32.mrb[0].mxu0
    %v203 = vpop.f32.mrb[0].mxu0
    %v204 = vadd.f32 %v116, %v203
    %v205 = vpop.f32.mrb[0].mxu0
    %206 = vdwg.mxu0
    %207 = vst [vmem:[#allocation2] sm:$0xff] %v201
    %208 = vst [vmem:[#allocation2 + $0x8] sm:$0xff] %v204
    // Predicated region
    $region22: #{ppo_actor_forward.1} parent=1 // pred_check
      _
    $region23: #{ppo_actor_forward.1} parent=1 // pred_check_branch
      %210 = sbr.rel (0) target = $region25
    $region24: #{ppo_actor_forward.1} parent=1 // pred_region
      // Predicated region
      $region26: #{ppo_actor_forward.1} parent=24 // pred_check
        _
      $region27: #{ppo_actor_forward.1} parent=24 // pred_check_branch
        %212 = sbr.rel (0) target = $region29
      $region28: #{ppo_actor_forward.1} parent=24 // pred_region
        // Predicated region
        $region30: #{ppo_actor_forward.1} parent=28 // pred_check
          _
        $region31: #{ppo_actor_forward.1} parent=28 // pred_check_branch
          %214 = sbr.rel target = $region33
        $region32: #{ppo_actor_forward.1} parent=28 // pred_region
          // Predicated region
          $region45: #{ppo_actor_forward.1} parent=32 // pred_check
            _
          $region46: #{ppo_actor_forward.1} parent=32 // pred_check_branch
            %229 = sbr.rel (0) target = $region48
          $region47: #{ppo_actor_forward.1} parent=32 // pred_region
            loop: start=0, step=1, limit=1
            $region49: #{ppo_actor_forward.1} parent=47 // loop_pre_header
              _
            $region50: #{ppo_actor_forward.1} parent=47 // loop_header
              %s232 = sphi 0, %s236
              %p233 = scmp.ge.s32.totalorder %s232, 1
              %s237 = sphi [#allocation2], [#allocation2]
              %s238 = sphi %s5, %s5
            $region51: #{ppo_actor_forward.1} parent=47 // loop_header_branch
              %235 = sbr.rel (%p233) target = $region55
            $region52: #{ppo_actor_forward.1} parent=47 // loop_body
              %v239 = vld [vmem:[%s237] sm:$0x3]
              %240 = vst [vmem:[%s238] sm:$0x3] %v239
            $region53: #{ppo_actor_forward.1} parent=47 // loop_footer
              %s236 = sadd.s32 1, %s232
            $region54: #{ppo_actor_forward.1} parent=47 // loop_footer_branch
              %231 = sbr.rel target = $region50
            $region55: #{ppo_actor_forward.1} parent=47 // loop_exit
              _
          $region48: #{ppo_actor_forward.1} parent=32 // pred_fallthru
            _
        $region33: #{ppo_actor_forward.1} parent=28 // pred_fallthru
          _
        // Predicated region
        $region34: #{ppo_actor_forward.1} parent=28 // pred_check
          _
        $region35: #{ppo_actor_forward.1} parent=28 // pred_check_branch
          %216 = sbr.rel (0) target = $region37
        $region36: #{ppo_actor_forward.1} parent=28 // pred_region
          loop: start=0, step=1, limit=1
          $region38: #{ppo_actor_forward.1} parent=36 // loop_pre_header
            _
          $region39: #{ppo_actor_forward.1} parent=36 // loop_header
            %s219 = sphi 0, %s223
            %p220 = scmp.ge.s32.totalorder %s219, 1
            %s224 = sphi [#allocation2], [#allocation2]
            %s225 = sphi %s5, %s5
          $region40: #{ppo_actor_forward.1} parent=36 // loop_header_branch
            %222 = sbr.rel (%p220) target = $region44
          $region41: #{ppo_actor_forward.1} parent=36 // loop_body
            %v226 = vld [vmem:[%s224] sm:$0x3]
            %227 = vst [vmem:[%s225] sm:$0x3] %v226
          $region42: #{ppo_actor_forward.1} parent=36 // loop_footer
            %s223 = sadd.s32 1, %s219
          $region43: #{ppo_actor_forward.1} parent=36 // loop_footer_branch
            %218 = sbr.rel target = $region39
          $region44: #{ppo_actor_forward.1} parent=36 // loop_exit
            _
        $region37: #{ppo_actor_forward.1} parent=28 // pred_fallthru
          _
      $region29: #{ppo_actor_forward.1} parent=24 // pred_fallthru
        _
      %241 = vnop
    $region25: #{ppo_actor_forward.1} parent=1 // pred_fallthru
      _
    // Predicated region
    $region56: #{ppo_actor_forward.1} parent=1 // pred_check
      _
    $region57: #{ppo_actor_forward.1} parent=1 // pred_check_branch
      %243 = sbr.rel (0) target = $region59
    $region58: #{ppo_actor_forward.1} parent=1 // pred_region
      _
    $region59: #{ppo_actor_forward.1} parent=1 // pred_fallthru
      _

</llo_original>
